<compile_context>
chip_gen: v6e
topology: v6e:2x2x1
jax: 0.10.0
libtpu: 0.0.40
codegen_flags: <defaults>
</compile_context>

<pallas_src>
import functools

import jax
import jax.numpy as jnp
from jax.experimental import pallas as pl
from jax.experimental.pallas import tpu as pltpu


# ----------------------------------------------------------------------------
# Fused kernel: MLP -> grouped softmax/log-softmax -> feasibility epilogue
# ----------------------------------------------------------------------------
def _fused_net_kernel_factory(n_layer_pairs, BB, T, G, M):
    GM = G * M
    R = BB * T  # rows per grid step (BB whole trajectories)

    def kernel(*refs):
        # ---- unpack refs (inputs ..., then outputs) ------------------------
        x_ref = refs[0]
        idx = 1
        layer_refs = []
        for _ in range(n_layer_pairs):
            layer_refs.append((refs[idx], refs[idx + 1]))
            idx += 2
        wp_ref, bp_ref = refs[idx], refs[idx + 1]
        fblk_ref, onesblk_ref, gsum_ref = refs[idx + 2], refs[idx + 3], refs[idx + 4]
        feas_ref, final_ref, init_ref = refs[idx + 5], refs[idx + 6], refs[idx + 7]

        # ---- MLP (rows = BB trajectories x T timesteps) ---------------------
        x = x_ref[...]                                   # (R, 2)
        w0 = layer_refs[0][0][...]                       # (2, 128)
        b0 = layer_refs[0][1][...]                       # (1, 128)
        # K=2 matmul is far below MXU depth -> two VPU broadcast-FMAs.
        h = x[:, 0:1] * w0[0:1, :] + x[:, 1:2] * w0[1:2, :] + b0
        h = jnp.maximum(h, 0.0)
        for (w_ref, b_ref) in layer_refs[1:]:
            h = jnp.dot(h, w_ref[...], preferred_element_type=jnp.float32) + b_ref[...]
            h = jnp.maximum(h, 0.0)
        # Dropout(p=0.0) in the reference is an identity -> omitted.
        z = jnp.dot(h, wp_ref[...], preferred_element_type=jnp.float32) + bp_ref[...]
        # z: (R, GM), lane = g*M + m  (guess-major, mode-minor)

        # ---- per-guess softmax / log-softmax, no (R*G, M) reshape ----------
        pos = jax.lax.broadcasted_iota(jnp.int32, (R, GM), 1) % M   # pos in group

        def group_roll(v, s):
            # cyclic shift by +s *within* each group of M lanes, built from
            # unambiguous static lane slices + select (VPU/XLU work).
            left = jnp.concatenate([v[:, s:], v[:, :s]], axis=1)             # lane <- lane+s
            k = M - s
            right = jnp.concatenate([v[:, GM - k:], v[:, :GM - k]], axis=1)  # lane <- lane-k
            return jnp.where(pos < M - s, left, right)

        gmax = z
        s = 1
        while s < M:                       # doubling tree; max is idempotent
            gmax = jnp.maximum(gmax, group_roll(gmax, s))
            s *= 2
        zc = z - gmax                                    # group max subtracted
        e = jnp.exp(zc)
        # block-ones matmul broadcasts each group's sum back to all its lanes
        ssum = jnp.dot(e, onesblk_ref[...], preferred_element_type=jnp.float32)
        mode = e / ssum                                  # softmax     (R, GM)
        mode_log = zc - jnp.log(ssum)                    # log-softmax (R, GM)

        # ---- init/final log-mode rows (t = 0 / t = T-1 per trajectory) -----
        init_rows = [mode_log[b * T:b * T + 1, :] for b in range(BB)]
        fin_rows = [mode_log[b * T + T - 1:b * T + T, :] for b in range(BB)]
        init_ref[...] = init_rows[0] if BB == 1 else jnp.concatenate(init_rows, axis=0)
        final_ref[...] = fin_rows[0] if BB == 1 else jnp.concatenate(fin_rows, axis=0)

        # ---- feasibility epilogue -------------------------------------------
        # curr_feas[:, g*M+k] = sum_m mode[:, g*M+m] * feasible[m, k]
        curr_feas = jnp.dot(mode, fblk_ref[...], preferred_element_type=jnp.float32)
        # next-timestep mode = mode rolled up one row.  Rows at t == T-1 become
        # cross-trajectory garbage; the wrapper slices them off after reshape.
        mode_next = jnp.concatenate([mode[1:, :], mode[:1, :]], axis=0)
        prod = curr_feas * mode_next                      # (R, GM)
        feas_ref[...] = jnp.dot(prod, gsum_ref[...],
                                preferred_element_type=jnp.float32)   # (R, G)

    return kernel


# ----------------------------------------------------------------------------
# Batch-block selection (keeps block shapes (8,128)-legal and VMEM-friendly)
# ----------------------------------------------------------------------------
def _pick_block_b(B, T, row_target=1024):
    """How many whole trajectories to process per grid step."""
    if B * T <= row_target:
        return B                      # one tile == full arrays: always legal
    best = None
    for d in range(8, B, 8):          # d % 8 == 0 keeps all block dims aligned
        if B % d == 0 and d * T <= row_target:
            best = d
    return best if best is not None else B


# ----------------------------------------------------------------------------
# Wrapper: one pallas_call, grid over blocks of trajectories
# ----------------------------------------------------------------------------
def net_forward(params, x, *, traj_len, num_guess, num_modes):
    B, T, two = x.shape
    assert T == traj_len and two == 2
    G, M = num_guess, num_modes
    GM = G * M

    layers = params["layers"]
    wp, bp = params["predit"]
    feas_mat = params["feasible"]

    # Small constant matrices (built once, outside the kernel):
    eye_g = jnp.eye(G, dtype=jnp.float32)
    fblk = jnp.kron(eye_g, feas_mat.astype(jnp.float32))              # (GM, GM)
    ones_blk = jnp.kron(eye_g, jnp.ones((M, M), jnp.float32))         # (GM, GM)
    gsum = jnp.kron(eye_g, jnp.ones((M, 1), jnp.float32))             # (GM, G)

    BB = _pick_block_b(B, T)
    R = BB * T
    nb = B // BB

    x2d = x.reshape(B * T, 2)          # matches PyTorch reshape(-1, 2)

    inputs = [x2d]
    in_specs = [pl.BlockSpec((R, 2), lambda i: (i, 0))]
    for (w, b) in layers:
        inputs += [w, b]
        in_specs += [pl.BlockSpec(w.shape, lambda i: (0, 0)),
                     pl.BlockSpec(b.shape, lambda i: (0, 0))]
    inputs += [wp, bp, fblk, ones_blk, gsum]
    in_specs += [pl.BlockSpec(wp.shape, lambda i: (0, 0)),
                 pl.BlockSpec(bp.shape, lambda i: (0, 0)),
                 pl.BlockSpec(fblk.shape, lambda i: (0, 0)),
                 pl.BlockSpec(ones_blk.shape, lambda i: (0, 0)),
                 pl.BlockSpec(gsum.shape, lambda i: (0, 0))]

    out_shape = (jax.ShapeDtypeStruct((B * T, G), jnp.float32),   # feas (all t)
                 jax.ShapeDtypeStruct((B, GM), jnp.float32),      # final_mode (log)
                 jax.ShapeDtypeStruct((B, GM), jnp.float32))      # init_mode  (log)
    out_specs = (pl.BlockSpec((R, G), lambda i: (i, 0)),
                 pl.BlockSpec((BB, GM), lambda i: (i, 0)),
                 pl.BlockSpec((BB, GM), lambda i: (i, 0)))

    feas_full, final_rows, init_rows = pl.pallas_call(
        _fused_net_kernel_factory(len(layers), BB, T, G, M),
        grid=(nb,),
        out_shape=out_shape,
        in_specs=in_specs,
        out_specs=out_specs,
        compiler_params=pltpu.CompilerParams(
            dimension_semantics=("parallel",)),       # shards across TCs on v7x
    )(*inputs)

    # Drop the (garbage) trajectory-boundary rows and restore module shapes.
    feasibility = feas_full.reshape(B, T, G)[:, :T - 1, :]
    final_mode = final_rows.reshape(B, G, M)
    init_mode = init_rows.reshape(B, G, M)
    return feasibility, final_mode, init_mode


# ----------------------------------------------------------------------------
# Parameter init (deterministic, PyTorch-Linear-style uniform bounds)
# ----------------------------------------------------------------------------
def init_linear(key, fan_in, fan_out):
    kw, kb = jax.random.split(key)
    bound = 1.0 / float(fan_in) ** 0.5
    w = jax.random.uniform(kw, (fan_in, fan_out), jnp.float32, -bound, bound)
    b = jax.random.uniform(kb, (1, fan_out), jnp.float32, -bound, bound)
    return w, b


def init_params(key, num_layers, num_modes, num_guess, hidden=128):
    assert num_layers >= 2
    keys = jax.random.split(key, num_layers + 1)
    layers = [init_linear(keys[0], 2, hidden)]
    for li in range(num_layers - 2):
        layers.append(init_linear(keys[1 + li], hidden, hidden))
    predit = init_linear(keys[num_layers - 1], hidden, num_modes * num_guess)
    feasible = jax.random.uniform(keys[num_layers], (num_modes, num_modes),
                                  jnp.float32, 0.0, 1.0)
    return {"layers": layers, "predit": predit, "feasible": feasible}


# ----------------------------------------------------------------------------
# Pure-JAX reference for correctness check
# ----------------------------------------------------------------------------
def net_forward_ref(params, x, *, traj_len, num_guess, num_modes):
    B = x.shape[0]
    out = x.reshape(-1, 2)
    for (w, b) in params["layers"]:
        out = jnp.maximum(out @ w + b, 0.0)
    wp, bp = params["predit"]
    out = (out @ wp + bp).reshape(-1, num_modes)
    mode = jax.nn.softmax(out, axis=1)
    mode_log = jax.nn.log_softmax(out, axis=1)
    mode = mode.reshape(B, traj_len, num_guess, num_modes)
    mode_log = mode_log.reshape(B, traj_len, num_guess, num_modes)
    final_mode = mode_log[:, -1]
    init_mode = mode_log[:, 0]
    curr = mode[:, :traj_len - 1]
    nxt = mode[:, 1:]
    cf = jnp.einsum("btgm,mk->btgk", curr, params["feasible"])
    feasibility = jnp.sum(cf * nxt, axis=-1)
    return feasibility, final_mode, init_mode


if __name__ == "__main__":
    # Small deterministic configuration consistent with the module.
    B, TRAJ_LEN, NUM_MODES, NUM_GUESS, NUM_LAYERS = 2, 8, 4, 4, 3

    key = jax.random.PRNGKey(0)
    k_params, k_x = jax.random.split(key)
    params = init_params(k_params, NUM_LAYERS, NUM_MODES, NUM_GUESS)
    x = jax.random.normal(k_x, (B, TRAJ_LEN, 2), jnp.float32)

    fwd = functools.partial(net_forward, traj_len=TRAJ_LEN,
                            num_guess=NUM_GUESS, num_modes=NUM_MODES)
    feasibility, final_mode, init_mode = jax.jit(fwd)(params, x)
    jax.block_until_ready((feasibility, final_mode, init_mode))

    # Shape checks (mirror the asserts in the PyTorch forward).
    assert feasibility.shape == (B, TRAJ_LEN - 1, NUM_GUESS)
    assert final_mode.shape == (B, NUM_GUESS, NUM_MODES)
    assert init_mode.shape == (B, NUM_GUESS, NUM_MODES)

    # Numerical check against the pure-JAX reference.
    ref_f, ref_fin, ref_init = net_forward_ref(
        params, x, traj_len=TRAJ_LEN, num_guess=NUM_GUESS, num_modes=NUM_MODES)
    assert jnp.allclose(feasibility, ref_f, atol=1e-4, rtol=1e-4)
    assert jnp.allclose(final_mode, ref_fin, atol=1e-4, rtol=1e-4)
    assert jnp.allclose(init_mode, ref_init, atol=1e-4, rtol=1e-4)

    print("KERNEL_OK")
</pallas_src>

<mosaic_0001>
module attributes {stable_mosaic.version = 11 : i64} {
  func.func @kernel(%arg0: i32, %arg1: memref<16x2xf32, #tpu.memory_space<vmem>>, %arg2: memref<2x128xf32, #tpu.memory_space<vmem>>, %arg3: memref<1x128xf32, #tpu.memory_space<vmem>>, %arg4: memref<128x128xf32, #tpu.memory_space<vmem>>, %arg5: memref<1x128xf32, #tpu.memory_space<vmem>>, %arg6: memref<128x16xf32, #tpu.memory_space<vmem>>, %arg7: memref<1x16xf32, #tpu.memory_space<vmem>>, %arg8: memref<16x16xf32, #tpu.memory_space<vmem>>, %arg9: memref<16x16xf32, #tpu.memory_space<vmem>>, %arg10: memref<16x4xf32, #tpu.memory_space<vmem>>, %arg11: memref<16x4xf32, #tpu.memory_space<vmem>>, %arg12: memref<2x16xf32, #tpu.memory_space<vmem>>, %arg13: memref<2x16xf32, #tpu.memory_space<vmem>>) attributes {dimension_semantics = [#tpu.dimension_semantics<parallel>], iteration_bounds = array<i64: 1>, scalar_prefetch = 0 : i64, scratch_operands = 0 : i64, tpu.core_type = #tpu.core_type<tc>, window_params = [{transform_indices = @transform_0, window_bounds = array<i64: 16, 2>}, {pipeline_mode = #tpu.pipeline_mode<synchronous>, transform_indices = @transform_1, window_bounds = array<i64: 2, 128>}, {pipeline_mode = #tpu.pipeline_mode<synchronous>, transform_indices = @transform_2, window_bounds = array<i64: 1, 128>}, {pipeline_mode = #tpu.pipeline_mode<synchronous>, transform_indices = @transform_3, window_bounds = array<i64: 128, 128>}, {pipeline_mode = #tpu.pipeline_mode<synchronous>, transform_indices = @transform_4, window_bounds = array<i64: 1, 128>}, {pipeline_mode = #tpu.pipeline_mode<synchronous>, transform_indices = @transform_5, window_bounds = array<i64: 128, 16>}, {pipeline_mode = #tpu.pipeline_mode<synchronous>, transform_indices = @transform_6, window_bounds = array<i64: 1, 16>}, {pipeline_mode = #tpu.pipeline_mode<synchronous>, transform_indices = @transform_7, window_bounds = array<i64: 16, 16>}, {pipeline_mode = #tpu.pipeline_mode<synchronous>, transform_indices = @transform_8, window_bounds = array<i64: 16, 16>}, {pipeline_mode = #tpu.pipeline_mode<synchronous>, transform_indices = @transform_9, window_bounds = array<i64: 16, 4>}, {transform_indices = @transform_10, window_bounds = array<i64: 16, 4>}, {transform_indices = @transform_11, window_bounds = array<i64: 2, 16>}, {transform_indices = @transform_12, window_bounds = array<i64: 2, 16>}]} {
    %c0 = arith.constant 0 : index
    %c0_0 = arith.constant 0 : index
    %0 = vector.load %arg1[%c0, %c0_0] : memref<16x2xf32, #tpu.memory_space<vmem>>, vector<16x2xf32>
    %c0_1 = arith.constant 0 : index
    %c0_2 = arith.constant 0 : index
    %1 = vector.load %arg2[%c0_1, %c0_2] : memref<2x128xf32, #tpu.memory_space<vmem>>, vector<2x128xf32>
    %c0_3 = arith.constant 0 : index
    %c0_4 = arith.constant 0 : index
    %2 = vector.load %arg3[%c0_3, %c0_4] : memref<1x128xf32, #tpu.memory_space<vmem>>, vector<1x128xf32>
    %3 = vector.extract_strided_slice %0 {offsets = [0, 0], sizes = [16, 1], strides = [1, 1]} : vector<16x2xf32> to vector<16x1xf32>
    %4 = vector.extract_strided_slice %1 {offsets = [0, 0], sizes = [1, 128], strides = [1, 1]} : vector<2x128xf32> to vector<1x128xf32>
    %5 = vector.broadcast %3 : vector<16x1xf32> to vector<16x128xf32>
    %6 = vector.broadcast %4 : vector<1x128xf32> to vector<16x128xf32>
    %7 = arith.mulf %5, %6 : vector<16x128xf32>
    %8 = vector.extract_strided_slice %0 {offsets = [0, 1], sizes = [16, 1], strides = [1, 1]} : vector<16x2xf32> to vector<16x1xf32>
    %9 = vector.extract_strided_slice %1 {offsets = [1, 0], sizes = [1, 128], strides = [1, 1]} : vector<2x128xf32> to vector<1x128xf32>
    %10 = vector.broadcast %8 : vector<16x1xf32> to vector<16x128xf32>
    %11 = vector.broadcast %9 : vector<1x128xf32> to vector<16x128xf32>
    %12 = arith.mulf %10, %11 : vector<16x128xf32>
    %13 = arith.addf %7, %12 : vector<16x128xf32>
    %14 = vector.broadcast %2 : vector<1x128xf32> to vector<16x128xf32>
    %15 = arith.addf %13, %14 : vector<16x128xf32>
    %cst = arith.constant 0.000000e+00 : f32
    %16 = vector.broadcast %cst : f32 to vector<16x128xf32>
    %17 = arith.maximumf %15, %16 : vector<16x128xf32>
    %c0_5 = arith.constant 0 : index
    %c0_6 = arith.constant 0 : index
    %18 = vector.load %arg4[%c0_5, %c0_6] : memref<128x128xf32, #tpu.memory_space<vmem>>, vector<128x128xf32>
    %cst_7 = arith.constant dense<0.000000e+00> : vector<16x128xf32>
    %19 = tpu.matmul %17, %18, %cst_7 {dimension_numbers = #tpu.dot_dimension_numbers<[1], [0], [0], [1], [0, 0, 1, 1], [], []>} : vector<16x128xf32>, vector<128x128xf32>, vector<16x128xf32> -> vector<16x128xf32>
    %c0_8 = arith.constant 0 : index
    %c0_9 = arith.constant 0 : index
    %20 = vector.load %arg5[%c0_8, %c0_9] : memref<1x128xf32, #tpu.memory_space<vmem>>, vector<1x128xf32>
    %21 = vector.broadcast %20 : vector<1x128xf32> to vector<16x128xf32>
    %22 = arith.addf %19, %21 : vector<16x128xf32>
    %cst_10 = arith.constant 0.000000e+00 : f32
    %23 = vector.broadcast %cst_10 : f32 to vector<16x128xf32>
    %24 = arith.maximumf %22, %23 : vector<16x128xf32>
    %c0_11 = arith.constant 0 : index
    %c0_12 = arith.constant 0 : index
    %25 = vector.load %arg6[%c0_11, %c0_12] : memref<128x16xf32, #tpu.memory_space<vmem>>, vector<128x16xf32>
    %cst_13 = arith.constant dense<0.000000e+00> : vector<16x16xf32>
    %26 = tpu.matmul %24, %25, %cst_13 {dimension_numbers = #tpu.dot_dimension_numbers<[1], [0], [0], [1], [0, 0, 1, 1], [], []>} : vector<16x128xf32>, vector<128x16xf32>, vector<16x16xf32> -> vector<16x16xf32>
    %c0_14 = arith.constant 0 : index
    %c0_15 = arith.constant 0 : index
    %27 = vector.load %arg7[%c0_14, %c0_15] : memref<1x16xf32, #tpu.memory_space<vmem>>, vector<1x16xf32>
    %28 = vector.broadcast %27 : vector<1x16xf32> to vector<16x16xf32>
    %29 = arith.addf %26, %28 : vector<16x16xf32>
    %30 = tpu.iota {dimensions = array<i32: 1>} : vector<16x16xi32>
    %c4_i32 = arith.constant 4 : i32
    %c0_i32 = arith.constant 0 : i32
    %31 = arith.cmpi eq, %c4_i32, %c0_i32 : i32
    %c1_i32 = arith.constant 1 : i32
    %32 = arith.select %31, %c1_i32, %c4_i32 : i32
    %33 = vector.broadcast %32 : i32 to vector<16x16xi32>
    %34 = arith.remsi %30, %33 : vector<16x16xi32>
    %c0_i32_16 = arith.constant 0 : i32
    %35 = vector.broadcast %c0_i32_16 : i32 to vector<16x16xi32>
    %36 = arith.cmpi ne, %34, %35 : vector<16x16xi32>
    %c0_i32_17 = arith.constant 0 : i32
    %37 = vector.broadcast %c0_i32_17 : i32 to vector<16x16xi32>
    %38 = arith.cmpi slt, %34, %37 : vector<16x16xi32>
    %c0_i32_18 = arith.constant 0 : i32
    %39 = arith.cmpi slt, %32, %c0_i32_18 : i32
    %40 = vector.broadcast %39 : i1 to vector<16x16xi1>
    %41 = vector.broadcast %40 : vector<16x16xi1> to vector<16x16xi1>
    %42 = arith.xori %38, %41 : vector<16x16xi1>
    %43 = arith.andi %42, %36 : vector<16x16xi1>
    %44 = vector.broadcast %32 : i32 to vector<16x16xi32>
    %45 = arith.addi %34, %44 : vector<16x16xi32>
    %46 = arith.select %43, %45, %34 : vector<16x16xi1>, vector<16x16xi32>
    %47 = vector.extract_strided_slice %29 {offsets = [0, 1], sizes = [16, 15], strides = [1, 1]} : vector<16x16xf32> to vector<16x15xf32>
    %48 = vector.extract_strided_slice %29 {offsets = [0, 0], sizes = [16, 1], strides = [1, 1]} : vector<16x16xf32> to vector<16x1xf32>
    %49 = tpu.concatenate %47, %48 in 1 : vector<16x15xf32>, vector<16x1xf32> -> vector<16x16xf32>
    %50 = vector.extract_strided_slice %29 {offsets = [0, 13], sizes = [16, 3], strides = [1, 1]} : vector<16x16xf32> to vector<16x3xf32>
    %51 = vector.extract_strided_slice %29 {offsets = [0, 0], sizes = [16, 13], strides = [1, 1]} : vector<16x16xf32> to vector<16x13xf32>
    %52 = tpu.concatenate %50, %51 in 1 : vector<16x3xf32>, vector<16x13xf32> -> vector<16x16xf32>
    %c3_i32 = arith.constant 3 : i32
    %53 = vector.broadcast %c3_i32 : i32 to vector<16x16xi32>
    %54 = arith.cmpi slt, %46, %53 : vector<16x16xi32>
    %55 = arith.select %54, %49, %52 : vector<16x16xi1>, vector<16x16xf32>
    %56 = arith.maximumf %29, %55 : vector<16x16xf32>
    %57 = vector.extract_strided_slice %56 {offsets = [0, 2], sizes = [16, 14], strides = [1, 1]} : vector<16x16xf32> to vector<16x14xf32>
    %58 = vector.extract_strided_slice %56 {offsets = [0, 0], sizes = [16, 2], strides = [1, 1]} : vector<16x16xf32> to vector<16x2xf32>
    %59 = tpu.concatenate %57, %58 in 1 : vector<16x14xf32>, vector<16x2xf32> -> vector<16x16xf32>
    %60 = vector.extract_strided_slice %56 {offsets = [0, 14], sizes = [16, 2], strides = [1, 1]} : vector<16x16xf32> to vector<16x2xf32>
    %61 = vector.extract_strided_slice %56 {offsets = [0, 0], sizes = [16, 14], strides = [1, 1]} : vector<16x16xf32> to vector<16x14xf32>
    %62 = tpu.concatenate %60, %61 in 1 : vector<16x2xf32>, vector<16x14xf32> -> vector<16x16xf32>
    %c2_i32 = arith.constant 2 : i32
    %63 = vector.broadcast %c2_i32 : i32 to vector<16x16xi32>
    %64 = arith.cmpi slt, %46, %63 : vector<16x16xi32>
    %65 = arith.select %64, %59, %62 : vector<16x16xi1>, vector<16x16xf32>
    %66 = arith.maximumf %56, %65 : vector<16x16xf32>
    %67 = arith.subf %29, %66 : vector<16x16xf32>
    %68 = math.exp %67 : vector<16x16xf32>
    %c0_19 = arith.constant 0 : index
    %c0_20 = arith.constant 0 : index
    %69 = vector.load %arg9[%c0_19, %c0_20] : memref<16x16xf32, #tpu.memory_space<vmem>>, vector<16x16xf32>
    %cst_21 = arith.constant dense<0.000000e+00> : vector<16x16xf32>
    %70 = tpu.matmul %68, %69, %cst_21 {dimension_numbers = #tpu.dot_dimension_numbers<[1], [0], [0], [1], [0, 0, 1, 1], [], []>} : vector<16x16xf32>, vector<16x16xf32>, vector<16x16xf32> -> vector<16x16xf32>
    %71 = arith.divf %68, %70 : vector<16x16xf32>
    %72 = math.log %70 : vector<16x16xf32>
    %73 = arith.subf %67, %72 : vector<16x16xf32>
    %74 = vector.extract_strided_slice %73 {offsets = [0, 0], sizes = [1, 16], strides = [1, 1]} : vector<16x16xf32> to vector<1x16xf32>
    %75 = vector.extract_strided_slice %73 {offsets = [8, 0], sizes = [1, 16], strides = [1, 1]} : vector<16x16xf32> to vector<1x16xf32>
    %76 = vector.extract_strided_slice %73 {offsets = [7, 0], sizes = [1, 16], strides = [1, 1]} : vector<16x16xf32> to vector<1x16xf32>
    %77 = vector.extract_strided_slice %73 {offsets = [15, 0], sizes = [1, 16], strides = [1, 1]} : vector<16x16xf32> to vector<1x16xf32>
    %78 = tpu.concatenate %74, %75 in 0 : vector<1x16xf32>, vector<1x16xf32> -> vector<2x16xf32>
    %c0_22 = arith.constant 0 : index
    %c0_23 = arith.constant 0 : index
    %79 = vector.load %arg13[%c0_22, %c0_23] : memref<2x16xf32, #tpu.memory_space<vmem>>, vector<2x16xf32>
    tpu.vector_store %arg13[%c0_22, %c0_23], %78 {strides = array<i32>} : memref<2x16xf32, #tpu.memory_space<vmem>>, vector<2x16xf32>,
    %80 = tpu.concatenate %76, %77 in 0 : vector<1x16xf32>, vector<1x16xf32> -> vector<2x16xf32>
    %c0_24 = arith.constant 0 : index
    %c0_25 = arith.constant 0 : index
    %81 = vector.load %arg12[%c0_24, %c0_25] : memref<2x16xf32, #tpu.memory_space<vmem>>, vector<2x16xf32>
    tpu.vector_store %arg12[%c0_24, %c0_25], %80 {strides = array<i32>} : memref<2x16xf32, #tpu.memory_space<vmem>>, vector<2x16xf32>,
    %c0_26 = arith.constant 0 : index
    %c0_27 = arith.constant 0 : index
    %82 = vector.load %arg8[%c0_26, %c0_27] : memref<16x16xf32, #tpu.memory_space<vmem>>, vector<16x16xf32>
    %cst_28 = arith.constant dense<0.000000e+00> : vector<16x16xf32>
    %83 = tpu.matmul %71, %82, %cst_28 {dimension_numbers = #tpu.dot_dimension_numbers<[1], [0], [0], [1], [0, 0, 1, 1], [], []>} : vector<16x16xf32>, vector<16x16xf32>, vector<16x16xf32> -> vector<16x16xf32>
    %84 = vector.extract_strided_slice %71 {offsets = [1, 0], sizes = [15, 16], strides = [1, 1]} : vector<16x16xf32> to vector<15x16xf32>
    %85 = vector.extract_strided_slice %71 {offsets = [0, 0], sizes = [1, 16], strides = [1, 1]} : vector<16x16xf32> to vector<1x16xf32>
    %86 = tpu.concatenate %84, %85 in 0 : vector<15x16xf32>, vector<1x16xf32> -> vector<16x16xf32>
    %87 = arith.mulf %83, %86 : vector<16x16xf32>
    %c0_29 = arith.constant 0 : index
    %c0_30 = arith.constant 0 : index
    %88 = vector.load %arg10[%c0_29, %c0_30] : memref<16x4xf32, #tpu.memory_space<vmem>>, vector<16x4xf32>
    %cst_31 = arith.constant dense<0.000000e+00> : vector<16x4xf32>
    %89 = tpu.matmul %87, %88, %cst_31 {dimension_numbers = #tpu.dot_dimension_numbers<[1], [0], [0], [1], [0, 0, 1, 1], [], []>} : vector<16x16xf32>, vector<16x4xf32>, vector<16x4xf32> -> vector<16x4xf32>
    %c0_32 = arith.constant 0 : index
    %c0_33 = arith.constant 0 : index
    %90 = vector.load %arg11[%c0_32, %c0_33] : memref<16x4xf32, #tpu.memory_space<vmem>>, vector<16x4xf32>
    tpu.vector_store %arg11[%c0_32, %c0_33], %89 {strides = array<i32>} : memref<16x4xf32, #tpu.memory_space<vmem>>, vector<16x4xf32>,
    return
  }
  func.func @transform_0(%arg0: i32) -> (i32, i32) {
    %c0_i32 = arith.constant 0 : i32
    %c0_i32_0 = arith.constant 0 : i32
    return %arg0, %c0_i32 : i32, i32
  }
  func.func @transform_1(%arg0: i32) -> (i32, i32) {
    %c0_i32 = arith.constant 0 : i32
    %c0_i32_0 = arith.constant 0 : i32
    %c0_i32_1 = arith.constant 0 : i32
    return %c0_i32, %c0_i32_0 : i32, i32
  }
  func.func @transform_2(%arg0: i32) -> (i32, i32) {
    %c0_i32 = arith.constant 0 : i32
    %c0_i32_0 = arith.constant 0 : i32
    %c0_i32_1 = arith.constant 0 : i32
    return %c0_i32, %c0_i32_0 : i32, i32
  }
  func.func @transform_3(%arg0: i32) -> (i32, i32) {
    %c0_i32 = arith.constant 0 : i32
    %c0_i32_0 = arith.constant 0 : i32
    %c0_i32_1 = arith.constant 0 : i32
    return %c0_i32, %c0_i32_0 : i32, i32
  }
  func.func @transform_4(%arg0: i32) -> (i32, i32) {
    %c0_i32 = arith.constant 0 : i32
    %c0_i32_0 = arith.constant 0 : i32
    %c0_i32_1 = arith.constant 0 : i32
    return %c0_i32, %c0_i32_0 : i32, i32
  }
  func.func @transform_5(%arg0: i32) -> (i32, i32) {
    %c0_i32 = arith.constant 0 : i32
    %c0_i32_0 = arith.constant 0 : i32
    %c0_i32_1 = arith.constant 0 : i32
    return %c0_i32, %c0_i32_0 : i32, i32
  }
  func.func @transform_6(%arg0: i32) -> (i32, i32) {
    %c0_i32 = arith.constant 0 : i32
    %c0_i32_0 = arith.constant 0 : i32
    %c0_i32_1 = arith.constant 0 : i32
    return %c0_i32, %c0_i32_0 : i32, i32
  }
  func.func @transform_7(%arg0: i32) -> (i32, i32) {
    %c0_i32 = arith.constant 0 : i32
    %c0_i32_0 = arith.constant 0 : i32
    %c0_i32_1 = arith.constant 0 : i32
    return %c0_i32, %c0_i32_0 : i32, i32
  }
  func.func @transform_8(%arg0: i32) -> (i32, i32) {
    %c0_i32 = arith.constant 0 : i32
    %c0_i32_0 = arith.constant 0 : i32
    %c0_i32_1 = arith.constant 0 : i32
    return %c0_i32, %c0_i32_0 : i32, i32
  }
  func.func @transform_9(%arg0: i32) -> (i32, i32) {
    %c0_i32 = arith.constant 0 : i32
    %c0_i32_0 = arith.constant 0 : i32
    %c0_i32_1 = arith.constant 0 : i32
    return %c0_i32, %c0_i32_0 : i32, i32
  }
  func.func @transform_10(%arg0: i32) -> (i32, i32) {
    %c0_i32 = arith.constant 0 : i32
    %c0_i32_0 = arith.constant 0 : i32
    return %arg0, %c0_i32 : i32, i32
  }
  func.func @transform_11(%arg0: i32) -> (i32, i32) {
    %c0_i32 = arith.constant 0 : i32
    %c0_i32_0 = arith.constant 0 : i32
    return %arg0, %c0_i32 : i32, i32
  }
  func.func @transform_12(%arg0: i32) -> (i32, i32) {
    %c0_i32 = arith.constant 0 : i32
    %c0_i32_0 = arith.constant 0 : i32
    return %arg0, %c0_i32 : i32, i32
  }
}

</mosaic_0001>

<llo_original>
// kernel: mul.36
$region0: #{mul.36}
  #allocation0 [shape = 's32[1]{0}', space=sflag, size = 0x4, scoped, tag = 'scoped memory for mul.36']
  %s0 = inlined_call_operand.vmem [shape: f32[16,16], index: 0, kind: input, shape index: {}]
  %s1 = inlined_call_operand.vmem [shape: f32[16,16], index: 1, kind: input, shape index: {}]
  %s2 = inlined_call_operand.vmem [shape: f32[16,16], index: 2, kind: output, shape index: {}]
  %v3 = vld [vmem:[%s0] sm:$0xff]
  %v4 = vld [vmem:[%s1] sm:$0xff]
  %5 = xla_tuple %v3, %v4
  %6 = xla_tuple %5
  %v7 = vmul.f32 %v3, %v4
  %8 = xla_tuple %v7
  %9 = vst [vmem:[%s2] sm:$0xff] %v7
  %s10 = scalar_lea.vmem %s0, 8
  %v11 = vld [vmem:[%s10] sm:$0xff]
  %s12 = scalar_lea.vmem %s1, 8
  %v13 = vld [vmem:[%s12] sm:$0xff]
  %14 = xla_tuple %v11, %v13
  %15 = xla_tuple %14
  %v16 = vmul.f32 %v11, %v13
  %17 = xla_tuple %v16
  %s18 = scalar_lea.vmem %s2, 8
  %19 = vst [vmem:[%s18] sm:$0xff] %v16

// kernel: net_forward.1
$region0: #{net_forward.1}
  #allocation0 [shape = 'u32[]', space=smem, size = 0x4, offset = 0x4, fixed_abs, tag = 'smem constant byte address 0x4 - core index']
  #allocation1 [shape = 'u32[144,128]{1,0:T(1,128)}', space=vmem, size = 0x12000, scoped, tag = 'internal scratch']
  %s0 = inlined_call_operand.vmem [shape: f32[16,2], index: 0, kind: input, shape index: {}]
  %s1 = inlined_call_operand.vmem [shape: f32[2,128], index: 1, kind: input, shape index: {}]
  %s2 = inlined_call_operand.vmem [shape: f32[1,128], index: 2, kind: input, shape index: {}]
  %s3 = inlined_call_operand.vmem [shape: f32[128,128], index: 3, kind: input, shape index: {}]
  %s4 = inlined_call_operand.vmem [shape: f32[1,128], index: 4, kind: input, shape index: {}]
  %s5 = inlined_call_operand.vmem [shape: f32[128,16], index: 5, kind: input, shape index: {}]
  %s6 = inlined_call_operand.vmem [shape: f32[1,16], index: 6, kind: input, shape index: {}]
  %s7 = inlined_call_operand.vmem [shape: f32[16,16], index: 7, kind: input, shape index: {}]
  %s8 = inlined_call_operand.vmem [shape: f32[16,16], index: 8, kind: input, shape index: {}]
  %s9 = inlined_call_operand.vmem [shape: f32[16,4], index: 9, kind: input, shape index: {}]
  %s10 = inlined_call_operand.vmem [shape: f32[16,4], index: 10, kind: output, shape index: {0}]
  %s11 = inlined_call_operand.vmem [shape: f32[2,16], index: 11, kind: output, shape index: {1}]
  %s12 = inlined_call_operand.vmem [shape: f32[2,16], index: 12, kind: output, shape index: {2}]
  %13 = xla_tuple %s10, %s11, %s12
  %s14 = sld [smem:[#allocation0]]
  $region66: #{net_forward.1} parent=0
    _
  %s16 = ssub.s32 1, %s14
  %s17 = scalar_select 0, %s16, %s14
  // Predicated region
  $region2: #{net_forward.1} parent=0 // pred_check
    _
  $region3: #{net_forward.1} parent=0 // pred_check_branch
    %19 = sbr.rel (0) target = $region5
  $region4: #{net_forward.1} parent=0 // pred_region
    _
  $region5: #{net_forward.1} parent=0 // pred_fallthru
    _
  // Predicated region
  $region6: #{net_forward.1} parent=0 // pred_check
    _
  $region7: #{net_forward.1} parent=0 // pred_check_branch
    %21 = sbr.rel (0) target = $region9
  $region8: #{net_forward.1} parent=0 // pred_region
    _
  $region9: #{net_forward.1} parent=0 // pred_fallthru
    _
  // Predicated region
  $region10: #{net_forward.1} parent=0 // pred_check
    _
  $region11: #{net_forward.1} parent=0 // pred_check_branch
    %23 = sbr.rel (0) target = $region13
  $region12: #{net_forward.1} parent=0 // pred_region
    _
  $region13: #{net_forward.1} parent=0 // pred_fallthru
    _
  // Predicated region
  $region14: #{net_forward.1} parent=0 // pred_check
    _
  $region15: #{net_forward.1} parent=0 // pred_check_branch
    %25 = sbr.rel (0) target = $region17
  $region16: #{net_forward.1} parent=0 // pred_region
    _
  $region17: #{net_forward.1} parent=0 // pred_fallthru
    _
  // Predicated region
  $region18: #{net_forward.1} parent=0 // pred_check
    _
  $region19: #{net_forward.1} parent=0 // pred_check_branch
    %27 = sbr.rel (0) target = $region21
  $region20: #{net_forward.1} parent=0 // pred_region
    _
  $region21: #{net_forward.1} parent=0 // pred_fallthru
    _
  // Predicated region
  $region22: #{net_forward.1} parent=0 // pred_check
    _
  $region23: #{net_forward.1} parent=0 // pred_check_branch
    %29 = sbr.rel (0) target = $region25
  $region24: #{net_forward.1} parent=0 // pred_region
    _
  $region25: #{net_forward.1} parent=0 // pred_fallthru
    _
  // Predicated region
  $region26: #{net_forward.1} parent=0 // pred_check
    _
  $region27: #{net_forward.1} parent=0 // pred_check_branch
    %31 = sbr.rel (0) target = $region29
  $region28: #{net_forward.1} parent=0 // pred_region
    _
  $region29: #{net_forward.1} parent=0 // pred_fallthru
    _
  // Predicated region
  $region30: #{net_forward.1} parent=0 // pred_check
    _
  $region31: #{net_forward.1} parent=0 // pred_check_branch
    %33 = sbr.rel (0) target = $region33
  $region32: #{net_forward.1} parent=0 // pred_region
    _
  $region33: #{net_forward.1} parent=0 // pred_fallthru
    _
  // Predicated region
  $region34: #{net_forward.1} parent=0 // pred_check
    _
  $region35: #{net_forward.1} parent=0 // pred_check_branch
    %35 = sbr.rel (0) target = $region37
  $region36: #{net_forward.1} parent=0 // pred_region
    _
  $region37: #{net_forward.1} parent=0 // pred_fallthru
    _
  // Predicated region
  $region38: #{net_forward.1} parent=0 // pred_check
    _
  $region39: #{net_forward.1} parent=0 // pred_check_branch
    %37 = sbr.rel (0) target = $region41
  $region40: #{net_forward.1} parent=0 // pred_region
    _
  $region41: #{net_forward.1} parent=0 // pred_fallthru
    _
  %v38 = vld [vmem:[%s0] sm:$0xff]
  %v39 = vld [vmem:[%s0 + $0x8] sm:$0xff]
  %v40 = vld [vmem:[%s1] sm:$0x3]
  %v41 = vld [vmem:[%s2] sm:$0x1]
  %43 = vset.pattern.permute.xlu0 0
  %44 = vperm.xlu0 %43, %v38
  %v45 = vpop.permute.xlu0 %44
  %48 = vset.pattern.permute.xlu0 0
  %49 = vperm.xlu0 %48, %v39
  %v50 = vpop.permute.xlu0 %49
  %v52 = vlaneseq
  %v53 = vshrl.u32 %v52, 7
  %v54 = vsub.s32 0, %v53
  %v55 = vrot.slane %v40, %v54
  %v56 = vmul.f32 %v45, %v55
  %v57 = vmul.f32 %v50, %v55
  %58 = vset.pattern.permute.xlu0 1
  %59 = vperm.xlu0 %58, %v38
  %v60 = vpop.permute.xlu0 %59
  %62 = vset.pattern.permute.xlu0 1
  %63 = vperm.xlu0 %62, %v39
  %v64 = vpop.permute.xlu0 %63
  %v66 = vlaneseq
  %v67 = vshrl.u32 %v66, 7
  %v68 = vsub.s32 1, %v67
  %v69 = vrot.slane %v40, %v68
  %v70 = vmul.f32 %v60, %v69
  %v71 = vmul.f32 %v64, %v69
  %v72 = vadd.f32 %v56, %v70
  %v73 = vadd.f32 %v57, %v71
  %v75 = vlaneseq
  %v76 = vshrl.u32 %v75, 7
  %v77 = vsub.s32 0, %v76
  %v78 = vrot.slane %v41, %v77
  %v80 = vadd.f32 %v72, %v78
  %v81 = vadd.f32 %v73, %v78
  %v82 = vmax.f32 %v80, 0.0
  %v83 = vmax.f32 %v81, 0.0
  %v84 = vld [vmem:[%s3] sm:$0xff]
  %v85 = vld [vmem:[%s3 + $0x8] sm:$0xff]
  %v86 = vld [vmem:[%s3 + $0x10] sm:$0xff]
  %v87 = vld [vmem:[%s3 + $0x18] sm:$0xff]
  %v88 = vld [vmem:[%s3 + $0x20] sm:$0xff]
  %v89 = vld [vmem:[%s3 + $0x28] sm:$0xff]
  %v90 = vld [vmem:[%s3 + $0x30] sm:$0xff]
  %v91 = vld [vmem:[%s3 + $0x38] sm:$0xff]
  %v92 = vld [vmem:[%s3 + $0x40] sm:$0xff]
  %v93 = vld [vmem:[%s3 + $0x48] sm:$0xff]
  %v94 = vld [vmem:[%s3 + $0x50] sm:$0xff]
  %v95 = vld [vmem:[%s3 + $0x58] sm:$0xff]
  %v96 = vld [vmem:[%s3 + $0x60] sm:$0xff]
  %v97 = vld [vmem:[%s3 + $0x68] sm:$0xff]
  %v98 = vld [vmem:[%s3 + $0x70] sm:$0xff]
  %v99 = vld [vmem:[%s3 + $0x78] sm:$0xff]
  %v100 = vld [vmem:[%s4] sm:$0x1]
  %v102 = vlaneseq
  %v103 = vshrl.u32 %v102, 7
  %v104 = vsub.s32 0, %v103
  %v105 = vrot.slane %v100, %v104
  %107 = vmatprep.subr.mxu0 0.0
  %108 = vmatpush1.msra.mxu0 %v99
  %109 = vmatprep.subr.mxu0 0.0
  %110 = vmatpush1.msra.mxu0 %v98
  %111 = vmatprep.subr.mxu0 0.0
  %112 = vmatpush1.msra.mxu0 %v97
  %113 = vmatprep.subr.mxu0 0.0
  %114 = vmatpush1.msra.mxu0 %v96
  %115 = vmatprep.subr.mxu0 0.0
  %116 = vmatpush1.msra.mxu0 %v95
  %117 = vmatprep.subr.mxu0 0.0
  %118 = vmatpush1.msra.mxu0 %v94
  %119 = vmatprep.subr.mxu0 0.0
  %120 = vmatpush1.msra.mxu0 %v93
  %121 = vmatprep.subr.mxu0 0.0
  %122 = vmatpush1.msra.mxu0 %v92
  %123 = vmatprep.subr.mxu0 0.0
  %124 = vmatpush1.msra.mxu0 %v91
  %125 = vmatprep.subr.mxu0 0.0
  %126 = vmatpush1.msra.mxu0 %v90
  %127 = vmatprep.subr.mxu0 0.0
  %128 = vmatpush1.msra.mxu0 %v89
  %129 = vmatprep.subr.mxu0 0.0
  %130 = vmatpush1.msra.mxu0 %v88
  %131 = vmatprep.subr.mxu0 0.0
  %132 = vmatpush1.msra.mxu0 %v87
  %133 = vmatprep.subr.mxu0 0.0
  %134 = vmatpush1.msra.mxu0 %v86
  %135 = vmatprep.subr.mxu0 0.0
  %136 = vmatpush1.msra.mxu0 %v85
  %137 = vmatprep.subr.mxu0 0.0
  %138 = vmatpush1.msra.mxu0 %v84
  %139 = vmatprep.subr.mxu0 0.0
  %140 = vmatpush2.msra.mxu0 0.0
  %141 = vmatprep.subr.mxu0 0.0
  %142 = vmatpush2.msra.mxu0 0.0
  %143 = vmatprep.subr.mxu0 0.0
  %144 = vmatpush2.msra.mxu0 0.0
  %145 = vmatprep.subr.mxu0 0.0
  %146 = vmatpush2.msra.mxu0 0.0
  %147 = vmatprep.subr.mxu0 0.0
  %148 = vmatpush2.msra.mxu0 0.0
  %149 = vmatprep.subr.mxu0 0.0
  %150 = vmatpush2.msra.mxu0 0.0
  %151 = vmatprep.subr.mxu0 0.0
  %152 = vmatpush2.msra.mxu0 0.0
  %153 = vmatprep.subr.mxu0 0.0
  %154 = vmatpush2.msra.mxu0 0.0
  %155 = vmatprep.subr.mxu0 0.0
  %156 = vmatpush2.msra.mxu0 0.0
  %157 = vmatprep.subr.mxu0 0.0
  %158 = vmatpush2.msra.mxu0 0.0
  %159 = vmatprep.subr.mxu0 0.0
  %160 = vmatpush2.msra.mxu0 0.0
  %161 = vmatprep.subr.mxu0 0.0
  %162 = vmatpush2.msra.mxu0 0.0
  %163 = vmatprep.subr.mxu0 0.0
  %164 = vmatpush2.msra.mxu0 0.0
  %165 = vmatprep.subr.mxu0 0.0
  %166 = vmatpush2.msra.mxu0 0.0
  %167 = vmatprep.subr.mxu0 0.0
  %168 = vmatpush2.msra.mxu0 0.0
  %169 = vmatprep.subr.mxu0 0.0
  %170 = vmatpush2.msra.mxu0 0.0
  %171 = vmatprep.mubr.f32.mxu0 0.0
  %172 = vmatmul.mubr.f32.gmra.mxu0 %v82
  %v173 = vpop.f32.mrf.mxu0
  %v174 = vadd.f32 %v105, %v173
  %v175 = vpop.f32.mrf.mxu0
  %176 = vmatprep.mubr.f32.mxu0 0.0
  %177 = vmatmul.mubr.f32.gmra.mxu0 %v83
  %v178 = vpop.f32.mrf.mxu0
  %v179 = vadd.f32 %v105, %v178
  %v180 = vpop.f32.mrf.mxu0
  %181 = vdwg.mxu0
  %v182 = vmax.f32 %v174, 0.0
  %v183 = vmax.f32 %v179, 0.0
  %v184 = vld [vmem:[%s5] sm:$0xff]
  %v185 = vld [vmem:[%s5 + $0x8] sm:$0xff]
  %v186 = vld [vmem:[%s5 + $0x10] sm:$0xff]
  %v187 = vld [vmem:[%s5 + $0x18] sm:$0xff]
  %v188 = vld [vmem:[%s5 + $0x20] sm:$0xff]
  %v189 = vld [vmem:[%s5 + $0x28] sm:$0xff]
  %v190 = vld [vmem:[%s5 + $0x30] sm:$0xff]
  %v191 = vld [vmem:[%s5 + $0x38] sm:$0xff]
  %v192 = vld [vmem:[%s5 + $0x40] sm:$0xff]
  %v193 = vld [vmem:[%s5 + $0x48] sm:$0xff]
  %v194 = vld [vmem:[%s5 + $0x50] sm:$0xff]
  %v195 = vld [vmem:[%s5 + $0x58] sm:$0xff]
  %v196 = vld [vmem:[%s5 + $0x60] sm:$0xff]
  %v197 = vld [vmem:[%s5 + $0x68] sm:$0xff]
  %v198 = vld [vmem:[%s5 + $0x70] sm:$0xff]
  %v199 = vld [vmem:[%s5 + $0x78] sm:$0xff]
  %v200 = vld [vmem:[%s6] sm:$0x1]
  %v202 = vlaneseq
  %v203 = vshrl.u32 %v202, 7
  %v204 = vsub.s32 0, %v203
  %v205 = vrot.slane %v200, %v204
  %207 = vmatprep.subr.mxu0 0.0
  %208 = vmatpush1.msra.mxu0 %v199
  %209 = vmatprep.subr.mxu0 0.0
  %210 = vmatpush1.msra.mxu0 %v198
  %211 = vmatprep.subr.mxu0 0.0
  %212 = vmatpush1.msra.mxu0 %v197
  %213 = vmatprep.subr.mxu0 0.0
  %214 = vmatpush1.msra.mxu0 %v196
  %215 = vmatprep.subr.mxu0 0.0
  %216 = vmatpush1.msra.mxu0 %v195
  %217 = vmatprep.subr.mxu0 0.0
  %218 = vmatpush1.msra.mxu0 %v194
  %219 = vmatprep.subr.mxu0 0.0
  %220 = vmatpush1.msra.mxu0 %v193
  %221 = vmatprep.subr.mxu0 0.0
  %222 = vmatpush1.msra.mxu0 %v192
  %223 = vmatprep.subr.mxu0 0.0
  %224 = vmatpush1.msra.mxu0 %v191
  %225 = vmatprep.subr.mxu0 0.0
  %226 = vmatpush1.msra.mxu0 %v190
  %227 = vmatprep.subr.mxu0 0.0
  %228 = vmatpush1.msra.mxu0 %v189
  %229 = vmatprep.subr.mxu0 0.0
  %230 = vmatpush1.msra.mxu0 %v188
  %231 = vmatprep.subr.mxu0 0.0
  %232 = vmatpush1.msra.mxu0 %v187
  %233 = vmatprep.subr.mxu0 0.0
  %234 = vmatpush1.msra.mxu0 %v186
  %235 = vmatprep.subr.mxu0 0.0
  %236 = vmatpush1.msra.mxu0 %v185
  %237 = vmatprep.subr.mxu0 0.0
  %238 = vmatpush1.msra.mxu0 %v184
  %239 = vmatprep.subr.mxu0 0.0
  %240 = vmatpush2.msra.mxu0 0.0
  %241 = vmatprep.subr.mxu0 0.0
  %242 = vmatpush2.msra.mxu0 0.0
  %243 = vmatprep.subr.mxu0 0.0
  %244 = vmatpush2.msra.mxu0 0.0
  %245 = vmatprep.subr.mxu0 0.0
  %246 = vmatpush2.msra.mxu0 0.0
  %247 = vmatprep.subr.mxu0 0.0
  %248 = vmatpush2.msra.mxu0 0.0
  %249 = vmatprep.subr.mxu0 0.0
  %250 = vmatpush2.msra.mxu0 0.0
  %251 = vmatprep.subr.mxu0 0.0
  %252 = vmatpush2.msra.mxu0 0.0
  %253 = vmatprep.subr.mxu0 0.0
  %254 = vmatpush2.msra.mxu0 0.0
  %255 = vmatprep.subr.mxu0 0.0
  %256 = vmatpush2.msra.mxu0 0.0
  %257 = vmatprep.subr.mxu0 0.0
  %258 = vmatpush2.msra.mxu0 0.0
  %259 = vmatprep.subr.mxu0 0.0
  %260 = vmatpush2.msra.mxu0 0.0
  %261 = vmatprep.subr.mxu0 0.0
  %262 = vmatpush2.msra.mxu0 0.0
  %263 = vmatprep.subr.mxu0 0.0
  %264 = vmatpush2.msra.mxu0 0.0
  %265 = vmatprep.subr.mxu0 0.0
  %266 = vmatpush2.msra.mxu0 0.0
  %267 = vmatprep.subr.mxu0 0.0
  %268 = vmatpush2.msra.mxu0 0.0
  %269 = vmatprep.subr.mxu0 0.0
  %270 = vmatpush2.msra.mxu0 0.0
  %271 = vmatprep.mubr.f32.mxu0 0.0
  %272 = vmatmul.mubr.f32.gmra.mxu0 %v182
  %v273 = vpop.f32.mrf.mxu0
  %v274 = vadd.f32 %v205, %v273
  %v275 = vpop.f32.mrf.mxu0
  %276 = vmatprep.mubr.f32.mxu0 0.0
  %277 = vmatmul.mubr.f32.gmra.mxu0 %v183
  %v278 = vpop.f32.mrf.mxu0
  %v279 = vadd.f32 %v205, %v278
  %v280 = vpop.f32.mrf.mxu0
  %281 = vdwg.mxu0
  %v282 = vlaneseq
  %v283 = vand.u32 %v282, 127
  %vm284 = vcmp.lt.s32.totalorder %v283, 0
  %v285 = vsub.s32 0, %v283
  %v286 = vsel %vm284, %v285, %v283
  %v287 = vshrl.u32 %v286, 2
  %v288 = vand.u32 %v286, 3
  %v289 = vsub.s32 0, %v288
  %v290 = vsel %vm284, %v289, %v288
  %vm291 = vcmp.ne.s32.totalorder %v290, 0
  %vm292 = vcmp.lt.s32.totalorder %v290, 0
  %vm293 = vmand %vm292, %vm291
  %v294 = vadd.s32 %v290, 4
  %v295 = vsel %vm293, %v294, %v290
  %298 = vrot.lane.b32.xlu0 %v274, 127
  %v299 = vpop.permute.xlu0 %298
  %300 = vrot.lane.b32.xlu0 %v279, 127
  %v301 = vpop.permute.xlu0 %300
  %304 = vrot.lane.b32.xlu0 %v274, 15
  %v305 = vpop.permute.xlu0 %304
  %306 = vrot.lane.b32.xlu0 %v279, 15
  %v307 = vpop.permute.xlu0 %306
  %vm310 = vcmask 121856
  %v311 = vsel %vm310, %v299, %v305
  %v312 = vsel %vm310, %v301, %v307
  %313 = vrot.lane.b32.xlu0 %v274, 115
  %v314 = vpop.permute.xlu0 %313
  %315 = vrot.lane.b32.xlu0 %v279, 115
  %v316 = vpop.permute.xlu0 %315
  %319 = vrot.lane.b32.xlu0 %v274, 3
  %v320 = vpop.permute.xlu0 %319
  %321 = vrot.lane.b32.xlu0 %v279, 3
  %v322 = vpop.permute.xlu0 %321
  %vm325 = vcmask 23552
  %v326 = vsel %vm325, %v314, %v320
  %v327 = vsel %vm325, %v316, %v322
  %vm328 = vcmp.lt.s32.totalorder %v295, 3
  %v329 = vsel %vm328, %v311, %v326
  %v330 = vsel %vm328, %v312, %v327
  %v331 = vmax.f32 %v274, %v329
  %v332 = vmax.f32 %v279, %v330
  %335 = vrot.lane.b32.xlu0 %v331, 126
  %v336 = vpop.permute.xlu0 %335
  %337 = vrot.lane.b32.xlu0 %v332, 126
  %v338 = vpop.permute.xlu0 %337
  %341 = vrot.lane.b32.xlu0 %v331, 14
  %v342 = vpop.permute.xlu0 %341
  %343 = vrot.lane.b32.xlu0 %v332, 14
  %v344 = vpop.permute.xlu0 %343
  %vm347 = vcmask 113664
  %v348 = vsel %vm347, %v336, %v342
  %v349 = vsel %vm347, %v338, %v344
  %350 = vrot.lane.b32.xlu0 %v331, 114
  %v351 = vpop.permute.xlu0 %350
  %352 = vrot.lane.b32.xlu0 %v332, 114
  %v353 = vpop.permute.xlu0 %352
  %356 = vrot.lane.b32.xlu0 %v331, 2
  %v357 = vpop.permute.xlu0 %356
  %358 = vrot.lane.b32.xlu0 %v332, 2
  %v359 = vpop.permute.xlu0 %358
  %vm362 = vcmask 15360
  %v363 = vsel %vm362, %v351, %v357
  %v364 = vsel %vm362, %v353, %v359
  %vm365 = vcmp.lt.s32.totalorder %v295, 2
  %v366 = vsel %vm365, %v348, %v363
  %v367 = vsel %vm365, %v349, %v364
  %v368 = vmax.f32 %v331, %v366
  %v369 = vmax.f32 %v332, %v367
  %v370 = vsub.f32 %v274, %v368
  %v371 = vsub.f32 %v279, %v369
  %v372 = vmul.f32 %v370, 1.442695
  %v373 = vpow.pop %v372
  %v374 = vmul.f32 %v371, 1.442695
  %v375 = vpow.pop %v374
  %v376 = vld [vmem:[%s8] sm:$0xff]
  %v377 = vld [vmem:[%s8 + $0x8] sm:$0xff]
  %vm378 = vcmask 130048
  %v380 = vsel %vm378, %v373, 0
  %v383 = vsel %vm378, %v375, 0
  %385 = vmatprep.subr.mxu0 0.0
  %386 = vmatpush1.msra.mxu0 0.0
  %387 = vmatprep.subr.mxu0 0.0
  %388 = vmatpush1.msra.mxu0 0.0
  %389 = vmatprep.subr.mxu0 0.0
  %390 = vmatpush1.msra.mxu0 0.0
  %391 = vmatprep.subr.mxu0 0.0
  %392 = vmatpush1.msra.mxu0 0.0
  %393 = vmatprep.subr.mxu0 0.0
  %394 = vmatpush1.msra.mxu0 0.0
  %395 = vmatprep.subr.mxu0 0.0
  %396 = vmatpush1.msra.mxu0 0.0
  %397 = vmatprep.subr.mxu0 0.0
  %398 = vmatpush1.msra.mxu0 0.0
  %399 = vmatprep.subr.mxu0 0.0
  %400 = vmatpush1.msra.mxu0 0.0
  %401 = vmatprep.subr.mxu0 0.0
  %402 = vmatpush1.msra.mxu0 0.0
  %403 = vmatprep.subr.mxu0 0.0
  %404 = vmatpush1.msra.mxu0 0.0
  %405 = vmatprep.subr.mxu0 0.0
  %406 = vmatpush1.msra.mxu0 0.0
  %407 = vmatprep.subr.mxu0 0.0
  %408 = vmatpush1.msra.mxu0 0.0
  %409 = vmatprep.subr.mxu0 0.0
  %410 = vmatpush1.msra.mxu0 0.0
  %411 = vmatprep.subr.mxu0 0.0
  %412 = vmatpush1.msra.mxu0 0.0
  %413 = vmatprep.subr.mxu0 0.0
  %414 = vmatpush1.msra.mxu0 %v377
  %415 = vmatprep.subr.mxu0 0.0
  %416 = vmatpush1.msra.mxu0 %v376
  %417 = vmatprep.subr.mxu0 0.0
  %418 = vmatpush2.msra.mxu0 0.0
  %419 = vmatprep.subr.mxu0 0.0
  %420 = vmatpush2.msra.mxu0 0.0
  %421 = vmatprep.subr.mxu0 0.0
  %422 = vmatpush2.msra.mxu0 0.0
  %423 = vmatprep.subr.mxu0 0.0
  %424 = vmatpush2.msra.mxu0 0.0
  %425 = vmatprep.subr.mxu0 0.0
  %426 = vmatpush2.msra.mxu0 0.0
  %427 = vmatprep.subr.mxu0 0.0
  %428 = vmatpush2.msra.mxu0 0.0
  %429 = vmatprep.subr.mxu0 0.0
  %430 = vmatpush2.msra.mxu0 0.0
  %431 = vmatprep.subr.mxu0 0.0
  %432 = vmatpush2.msra.mxu0 0.0
  %433 = vmatprep.subr.mxu0 0.0
  %434 = vmatpush2.msra.mxu0 0.0
  %435 = vmatprep.subr.mxu0 0.0
  %436 = vmatpush2.msra.mxu0 0.0
  %437 = vmatprep.subr.mxu0 0.0
  %438 = vmatpush2.msra.mxu0 0.0
  %439 = vmatprep.subr.mxu0 0.0
  %440 = vmatpush2.msra.mxu0 0.0
  %441 = vmatprep.subr.mxu0 0.0
  %442 = vmatpush2.msra.mxu0 0.0
  %443 = vmatprep.subr.mxu0 0.0
  %444 = vmatpush2.msra.mxu0 0.0
  %445 = vmatprep.subr.mxu0 0.0
  %446 = vmatpush2.msra.mxu0 0.0
  %447 = vmatprep.subr.mxu0 0.0
  %448 = vmatpush2.msra.mxu0 0.0
  %449 = vmatprep.mubr.f32.mxu0 0.0
  %450 = vmatmul.mubr.f32.gmra.mxu0 %v380
  %v451 = vpop.f32.mrf.mxu0
  %v452 = vadd.f32 0.0, %v451
  %v453 = vpop.f32.mrf.mxu0
  %454 = vmatprep.mubr.f32.mxu0 0.0
  %455 = vmatmul.mubr.f32.gmra.mxu0 %v383
  %v456 = vpop.f32.mrf.mxu0
  %v457 = vadd.f32 0.0, %v456
  %v458 = vpop.f32.mrf.mxu0
  %459 = vdwg.mxu0
  %v460 = vrcp.pop %v452
  %v461 = vmul.f32 %v373, %v460
  %v462 = vrcp.pop %v457
  %v463 = vmul.f32 %v375, %v462
  %v464 = vlog2.pop %v452
  %v465 = vmul.f32 %v464, 0.6931472
  %v466 = vlog2.pop %v457
  %v467 = vmul.f32 %v466, 0.6931472
  %v468 = vsub.f32 %v370, %v465
  %v469 = vsub.f32 %v371, %v467
  %v471 = vrot.slane %v469, 7
  %vm473 = vcmask 1040384
  %v474 = vsel %vm473, %v468, %v471
  %vm475 = vcmask 123904
  %476 = vst.msk [vmem:[%s12] sm:$0x3] %vm475, %v474
  %v478 = vrot.slane %v468, 7
  %v480 = vrot.slane %v469, 6
  %v482 = vsel %vm473, %v478, %v480
  %483 = vst.msk [vmem:[%s11] sm:$0x3] %vm475, %v482
  %v484 = vld [vmem:[%s7] sm:$0xff]
  %v485 = vld [vmem:[%s7 + $0x8] sm:$0xff]
  %v487 = vsel %vm378, %v461, 0
  %v490 = vsel %vm378, %v463, 0
  %492 = vmatprep.subr.mxu0 0.0
  %493 = vmatpush1.msra.mxu0 0.0
  %494 = vmatprep.subr.mxu0 0.0
  %495 = vmatpush1.msra.mxu0 0.0
  %496 = vmatprep.subr.mxu0 0.0
  %497 = vmatpush1.msra.mxu0 0.0
  %498 = vmatprep.subr.mxu0 0.0
  %499 = vmatpush1.msra.mxu0 0.0
  %500 = vmatprep.subr.mxu0 0.0
  %501 = vmatpush1.msra.mxu0 0.0
  %502 = vmatprep.subr.mxu0 0.0
  %503 = vmatpush1.msra.mxu0 0.0
  %504 = vmatprep.subr.mxu0 0.0
  %505 = vmatpush1.msra.mxu0 0.0
  %506 = vmatprep.subr.mxu0 0.0
  %507 = vmatpush1.msra.mxu0 0.0
  %508 = vmatprep.subr.mxu0 0.0
  %509 = vmatpush1.msra.mxu0 0.0
  %510 = vmatprep.subr.mxu0 0.0
  %511 = vmatpush1.msra.mxu0 0.0
  %512 = vmatprep.subr.mxu0 0.0
  %513 = vmatpush1.msra.mxu0 0.0
  %514 = vmatprep.subr.mxu0 0.0
  %515 = vmatpush1.msra.mxu0 0.0
  %516 = vmatprep.subr.mxu0 0.0
  %517 = vmatpush1.msra.mxu0 0.0
  %518 = vmatprep.subr.mxu0 0.0
  %519 = vmatpush1.msra.mxu0 0.0
  %520 = vmatprep.subr.mxu0 0.0
  %521 = vmatpush1.msra.mxu0 %v485
  %522 = vmatprep.subr.mxu0 0.0
  %523 = vmatpush1.msra.mxu0 %v484
  %524 = vmatprep.subr.mxu0 0.0
  %525 = vmatpush2.msra.mxu0 0.0
  %526 = vmatprep.subr.mxu0 0.0
  %527 = vmatpush2.msra.mxu0 0.0
  %528 = vmatprep.subr.mxu0 0.0
  %529 = vmatpush2.msra.mxu0 0.0
  %530 = vmatprep.subr.mxu0 0.0
  %531 = vmatpush2.msra.mxu0 0.0
  %532 = vmatprep.subr.mxu0 0.0
  %533 = vmatpush2.msra.mxu0 0.0
  %534 = vmatprep.subr.mxu0 0.0
  %535 = vmatpush2.msra.mxu0 0.0
  %536 = vmatprep.subr.mxu0 0.0
  %537 = vmatpush2.msra.mxu0 0.0
  %538 = vmatprep.subr.mxu0 0.0
  %539 = vmatpush2.msra.mxu0 0.0
  %540 = vmatprep.subr.mxu0 0.0
  %541 = vmatpush2.msra.mxu0 0.0
  %542 = vmatprep.subr.mxu0 0.0
  %543 = vmatpush2.msra.mxu0 0.0
  %544 = vmatprep.subr.mxu0 0.0
  %545 = vmatpush2.msra.mxu0 0.0
  %546 = vmatprep.subr.mxu0 0.0
  %547 = vmatpush2.msra.mxu0 0.0
  %548 = vmatprep.subr.mxu0 0.0
  %549 = vmatpush2.msra.mxu0 0.0
  %550 = vmatprep.subr.mxu0 0.0
  %551 = vmatpush2.msra.mxu0 0.0
  %552 = vmatprep.subr.mxu0 0.0
  %553 = vmatpush2.msra.mxu0 0.0
  %554 = vmatprep.subr.mxu0 0.0
  %555 = vmatpush2.msra.mxu0 0.0
  %556 = vmatprep.mubr.f32.mxu0 0.0
  %557 = vmatmul.mubr.f32.gmra.mxu0 %v487
  %v558 = vpop.f32.mrf.mxu0
  %v559 = vadd.f32 0.0, %v558
  %v560 = vpop.f32.mrf.mxu0
  %561 = vmatprep.mubr.f32.mxu0 0.0
  %562 = vmatmul.mubr.f32.gmra.mxu0 %v490
  %v563 = vpop.f32.mrf.mxu0
  %v564 = vadd.f32 0.0, %v563
  %v565 = vpop.f32.mrf.mxu0
  %566 = vdwg.mxu0
  %vm567 = vcmask 1046528
  %v568 = vrot.slane %v461, 1
  %v569 = vrot.slane %v463, 1
  %v570 = vsel %vm567, %v568, %v569
  %v574 = vsel %vm567, %v569, %v568
  %v575 = vmul.f32 %v559, %v570
  %v576 = vmul.f32 %v564, %v574
  %v577 = vld [vmem:[%s9] sm:$0xff]
  %v578 = vld [vmem:[%s9 + $0x8] sm:$0xff]
  %v580 = vsel %vm378, %v575, 0
  %v583 = vsel %vm378, %v576, 0
  %585 = vmatprep.subr.mxu0 0.0
  %586 = vmatpush1.msra.mxu0 0.0
  %587 = vmatprep.subr.mxu0 0.0
  %588 = vmatpush1.msra.mxu0 0.0
  %589 = vmatprep.subr.mxu0 0.0
  %590 = vmatpush1.msra.mxu0 0.0
  %591 = vmatprep.subr.mxu0 0.0
  %592 = vmatpush1.msra.mxu0 0.0
  %593 = vmatprep.subr.mxu0 0.0
  %594 = vmatpush1.msra.mxu0 0.0
  %595 = vmatprep.subr.mxu0 0.0
  %596 = vmatpush1.msra.mxu0 0.0
  %597 = vmatprep.subr.mxu0 0.0
  %598 = vmatpush1.msra.mxu0 0.0
  %599 = vmatprep.subr.mxu0 0.0
  %600 = vmatpush1.msra.mxu0 0.0
  %601 = vmatprep.subr.mxu0 0.0
  %602 = vmatpush1.msra.mxu0 0.0
  %603 = vmatprep.subr.mxu0 0.0
  %604 = vmatpush1.msra.mxu0 0.0
  %605 = vmatprep.subr.mxu0 0.0
  %606 = vmatpush1.msra.mxu0 0.0
  %607 = vmatprep.subr.mxu0 0.0
  %608 = vmatpush1.msra.mxu0 0.0
  %609 = vmatprep.subr.mxu0 0.0
  %610 = vmatpush1.msra.mxu0 0.0
  %611 = vmatprep.subr.mxu0 0.0
  %612 = vmatpush1.msra.mxu0 0.0
  %613 = vmatprep.subr.mxu0 0.0
  %614 = vmatpush1.msra.mxu0 %v578
  %615 = vmatprep.subr.mxu0 0.0
  %616 = vmatpush1.msra.mxu0 %v577
  %617 = vmatprep.subr.mxu0 0.0
  %618 = vmatpush2.msra.mxu0 0.0
  %619 = vmatprep.subr.mxu0 0.0
  %620 = vmatpush2.msra.mxu0 0.0
  %621 = vmatprep.subr.mxu0 0.0
  %622 = vmatpush2.msra.mxu0 0.0
  %623 = vmatprep.subr.mxu0 0.0
  %624 = vmatpush2.msra.mxu0 0.0
  %625 = vmatprep.subr.mxu0 0.0
  %626 = vmatpush2.msra.mxu0 0.0
  %627 = vmatprep.subr.mxu0 0.0
  %628 = vmatpush2.msra.mxu0 0.0
  %629 = vmatprep.subr.mxu0 0.0
  %630 = vmatpush2.msra.mxu0 0.0
  %631 = vmatprep.subr.mxu0 0.0
  %632 = vmatpush2.msra.mxu0 0.0
  %633 = vmatprep.subr.mxu0 0.0
  %634 = vmatpush2.msra.mxu0 0.0
  %635 = vmatprep.subr.mxu0 0.0
  %636 = vmatpush2.msra.mxu0 0.0
  %637 = vmatprep.subr.mxu0 0.0
  %638 = vmatpush2.msra.mxu0 0.0
  %639 = vmatprep.subr.mxu0 0.0
  %640 = vmatpush2.msra.mxu0 0.0
  %641 = vmatprep.subr.mxu0 0.0
  %642 = vmatpush2.msra.mxu0 0.0
  %643 = vmatprep.subr.mxu0 0.0
  %644 = vmatpush2.msra.mxu0 0.0
  %645 = vmatprep.subr.mxu0 0.0
  %646 = vmatpush2.msra.mxu0 0.0
  %647 = vmatprep.subr.mxu0 0.0
  %648 = vmatpush2.msra.mxu0 0.0
  %649 = vmatprep.mubr.f32.mxu0 0.0
  %650 = vmatmul.mubr.f32.gmra.mxu0 %v580
  %v651 = vpop.f32.mrf.mxu0
  %v652 = vadd.f32 0.0, %v651
  %v653 = vpop.f32.mrf.mxu0
  %654 = vmatprep.mubr.f32.mxu0 0.0
  %655 = vmatmul.mubr.f32.gmra.mxu0 %v583
  %v656 = vpop.f32.mrf.mxu0
  %v657 = vadd.f32 0.0, %v656
  %v658 = vpop.f32.mrf.mxu0
  %659 = vdwg.mxu0
  %vm660 = vcmask 31744
  %661 = vst.msk [vmem:[%s10] sm:$0xff] %vm660, %v652
  %662 = vst.msk [vmem:[%s10 + $0x8] sm:$0xff] %vm660, %v657
  // Predicated region
  $region42: #{net_forward.1} parent=0 // pred_check
    _
  $region43: #{net_forward.1} parent=0 // pred_check_branch
    %664 = sbr.rel (0) target = $region45
  $region44: #{net_forward.1} parent=0 // pred_region
    _
  $region45: #{net_forward.1} parent=0 // pred_fallthru
    _
  // Predicated region
  $region46: #{net_forward.1} parent=0 // pred_check
    _
  $region47: #{net_forward.1} parent=0 // pred_check_branch
    %666 = sbr.rel (0) target = $region49
  $region48: #{net_forward.1} parent=0 // pred_region
    _
  $region49: #{net_forward.1} parent=0 // pred_fallthru
    _
  // Predicated region
  $region50: #{net_forward.1} parent=0 // pred_check
    _
  $region51: #{net_forward.1} parent=0 // pred_check_branch
    %668 = sbr.rel (0) target = $region53
  $region52: #{net_forward.1} parent=0 // pred_region
    _
  $region53: #{net_forward.1} parent=0 // pred_fallthru
    _
  // Predicated region
  $region54: #{net_forward.1} parent=0 // pred_check
    _
  $region55: #{net_forward.1} parent=0 // pred_check_branch
    %670 = sbr.rel (0) target = $region57
  $region56: #{net_forward.1} parent=0 // pred_region
    _
  $region57: #{net_forward.1} parent=0 // pred_fallthru
    _
  // Predicated region
  $region58: #{net_forward.1} parent=0 // pred_check
    _
  $region59: #{net_forward.1} parent=0 // pred_check_branch
    %672 = sbr.rel (0) target = $region61
  $region60: #{net_forward.1} parent=0 // pred_region
    _
  $region61: #{net_forward.1} parent=0 // pred_fallthru
    _
  // Predicated region
  $region62: #{net_forward.1} parent=0 // pred_check
    _
  $region63: #{net_forward.1} parent=0 // pred_check_branch
    %674 = sbr.rel (0) target = $region65
  $region64: #{net_forward.1} parent=0 // pred_region
    _
  $region65: #{net_forward.1} parent=0 // pred_fallthru
    _

</llo_original>
